<compile_context>
chip_gen: v6e
topology: v6e:2x2x1
jax: 0.10.0
libtpu: 0.0.40
codegen_flags: <defaults>
</compile_context>

<pallas_src>
import functools

import jax
import jax.numpy as jnp
from jax.experimental import pallas as pl
from jax.experimental.pallas import tpu as pltpu


def _round_up(x, m):
    return (x + m - 1) // m * m


# ----------------------------------------------------------------------------
# Fused kernel
# ----------------------------------------------------------------------------
def _fused_mlp_kernel(*refs, n_layers: int):
    """refs = (x_ref, w1, b1, ..., w_L, b_L, o_ref).

    Weights arrive pre-transposed to (in, out) and pre-cast to bf16; biases are
    f32 (1, out). Matmuls run bf16 on the MXU with f32 accumulation; bias add,
    ReLU and the final store happen in f32. All intermediates stay in
    VMEM/vregs -- no HBM traffic between layers.
    """
    x_ref = refs[0]
    o_ref = refs[-1]
    p = refs[1:-1]

    h = x_ref[...]
    for i in range(n_layers):
        w = p[2 * i][...]                       # (K_i, N_i), bf16, VMEM-resident
        b = p[2 * i + 1][...]                   # (1, N_i), f32
        y = jnp.dot(h.astype(jnp.bfloat16), w,
                    preferred_element_type=jnp.float32) + b
        h = jnp.maximum(y, 0.0) if i < n_layers - 1 else y
    o_ref[...] = h.astype(o_ref.dtype)


# Cache: does this JAX accept pipeline_mode=pl.Buffered(1) on pallas_call specs?
_SINGLE_BUFFER_OK = None


def _fused_mlp_call(x, hidden_wb, head_w, head_b, *, block_m=256):
    """One pallas_call for the full forward pass.

    x:         (M, K0) f32
    hidden_wb: list of (w_kn_bf16, b_1n_f32), w already (in, out)
    head_w:    (K_last, N_pad) bf16, N_pad a multiple of 128 (heads possibly
               concatenated), zero-padded columns
    head_b:    (1, N_pad) f32
    """
    global _SINGLE_BUFFER_OK

    M, K0 = x.shape
    n_out = head_w.shape[1]
    layers = list(hidden_wb) + [(head_w, head_b)]
    n_layers = len(layers)

    # Batch tiling. Keep >= 2 blocks for M > 16 so v7x megacore can split the
    # "parallel" axis across both TensorCores; otherwise one whole-array block.
    if M <= 16:
        tm = M
    else:
        tm = min(block_m, _round_up(pl.cdiv(M, 2), 8), M)
    grid = (pl.cdiv(M, tm),)   # no input padding: partial last block is masked

    flat_params = []
    for (w, b) in layers:
        flat_params.append(w)
        flat_params.append(b)

    # VMEM budget estimate: resident weights (x2 covers the double-buffered
    # fallback), live f32 intermediates, double-buffered x/out blocks, headroom.
    weight_bytes = sum(int(w.size) * w.dtype.itemsize +
                       int(b.size) * b.dtype.itemsize for (w, b) in layers)
    widest_n = max([K0] + [w.shape[1] for (w, _) in layers])
    est = (2 * weight_bytes
           + 2 * tm * widest_n * 4
           + 2 * tm * K0 * x.dtype.itemsize
           + 2 * tm * n_out * 4)
    vmem_limit = int(min(max(32 << 20, est + (8 << 20)), 64 << 20))
    # TODO(synk): for weight sets too large to stay VMEM-resident (esp. v7x's
    # 64 MiB), stream big layers from HBM (memory_space=pl.ANY + emit_pipeline)
    # instead of the fully-resident path used here.

    flops = 2 * M * sum(w.shape[0] * w.shape[1] for (w, _) in layers)
    bytes_accessed = int(M * K0 * x.dtype.itemsize + weight_bytes + M * n_out * 4)
    cost = pl.CostEstimate(flops=flops, transcendentals=0,
                           bytes_accessed=bytes_accessed)

    kernel = functools.partial(_fused_mlp_kernel, n_layers=n_layers)
    out_shape = jax.ShapeDtypeStruct((M, n_out), jnp.float32)
    x_spec = pl.BlockSpec((tm, K0), lambda i: (i, 0))
    out_spec = pl.BlockSpec((tm, n_out), lambda i: (i, 0))

    def build(single_buffer_weights):
        in_specs = [x_spec]
        for (w, b) in layers:
            kw = ({"pipeline_mode": pl.Buffered(1)}
                  if single_buffer_weights else {})
            # Weights/biases are replicated across the batch grid (constant
            # block index) -> resident in VMEM, no re-DMA per grid step.
            in_specs.append(pl.BlockSpec(w.shape, lambda i: (0, 0), **kw))
            in_specs.append(pl.BlockSpec(b.shape, lambda i: (0, 0), **kw))
        return pl.pallas_call(
            kernel,
            out_shape=out_shape,
            grid=grid,
            in_specs=in_specs,
            out_specs=out_spec,
            compiler_params=pltpu.CompilerParams(
                dimension_semantics=("parallel",),   # batch axis -> megacore
                vmem_limit_bytes=vmem_limit,
            ),
            cost_estimate=cost,
        )

    if _SINGLE_BUFFER_OK is None:
        try:
            y = build(True)(x, *flat_params)
            _SINGLE_BUFFER_OK = True
            return y
        except Exception:
            _SINGLE_BUFFER_OK = False
    return build(_SINGLE_BUFFER_OK)(x, *flat_params)


# ----------------------------------------------------------------------------
# Parameters (PyTorch-shaped init, then a one-time layout/dtype prep)
# ----------------------------------------------------------------------------
def init_mlp_params(key, input_dim, hidden_dims, output_dim, n_heads=1,
                    dtype=jnp.float32):
    """Deterministic init, PyTorch nn.Linear-shaped: W is (out, in), b is (out,)."""
    layer_dims = list(zip([input_dim] + hidden_dims, hidden_dims + [output_dim]))
    params = {"hidden": [], "heads": []}
    for (din, dout) in layer_dims[:-1]:
        key, kw, kb = jax.random.split(key, 3)
        bound = 1.0 / jnp.sqrt(din)
        w = jax.random.uniform(kw, (dout, din), dtype, -bound, bound)
        b = jax.random.uniform(kb, (dout,), dtype, -bound, bound)
        params["hidden"].append((w, b))
    din, dout = layer_dims[-1]
    for _ in range(n_heads):
        key, kw, kb = jax.random.split(key, 3)
        bound = 1.0 / jnp.sqrt(din)
        w = jax.random.uniform(kw, (dout, din), dtype, -bound, bound)
        b = jax.random.uniform(kb, (dout,), dtype, -bound, bound)
        params["heads"].append((w, b))
    return params


def prepare_mlp_params(params, compute_dtype=jnp.bfloat16):
    """One-time layout/dtype prep, hoisted out of the forward path:
      * hidden weights -> (in, out) bf16, biases -> (1, out) f32
      * per-head weights -> (in, 128-padded out) bf16 + matching f32 bias
      * cached all-heads concat -> (in, round_up(n_heads*out, 128)) bf16
    """
    out_dim = params["heads"][0][0].shape[0]
    for (w, _) in params["heads"]:
        assert w.shape[0] == out_dim, "all heads must share output_dim"
    n_heads = len(params["heads"])

    hidden = [(w.T.astype(compute_dtype), b.reshape(1, -1).astype(jnp.float32))
              for (w, b) in params["hidden"]]

    # Per-head, zero-padded to a lane-dense (multiple-of-128) output width.
    n_pad = _round_up(out_dim, 128)
    heads = []
    for (w, b) in params["heads"]:
        wt = jnp.pad(w.T.astype(compute_dtype), ((0, 0), (0, n_pad - out_dim)))
        bp = jnp.pad(b.reshape(1, -1).astype(jnp.float32),
                     ((0, 0), (0, n_pad - out_dim)))
        heads.append((wt, bp))

    # Cached concatenation of ALL heads (for head='all' / iterable paths),
    # zero-padded so the total output width is a multiple of 128.
    total = n_heads * out_dim
    total_pad = _round_up(total, 128)
    w_all = jnp.concatenate(
        [w.T.astype(compute_dtype) for (w, _) in params["heads"]], axis=1)
    b_all = jnp.concatenate(
        [b.reshape(1, -1).astype(jnp.float32) for (_, b) in params["heads"]],
        axis=1)
    w_all = jnp.pad(w_all, ((0, 0), (0, total_pad - total)))
    b_all = jnp.pad(b_all, ((0, 0), (0, total_pad - total)))

    return {"hidden": hidden, "heads": heads, "heads_all": (w_all, b_all),
            "out_dim": out_dim, "n_heads": n_heads}


# ----------------------------------------------------------------------------
# Forward (mirrors MLP.forward head handling)
# ----------------------------------------------------------------------------
def mlp_forward(prep_params, x, head=None, active_head=0):
    hidden = prep_params["hidden"]
    out_dim = prep_params["out_dim"]
    n_heads = prep_params["n_heads"]

    if head is None:
        head = active_head
    if isinstance(head, int):
        w, b = prep_params["heads"][head]
        y = _fused_mlp_call(x, hidden, w, b)
        return y[:, :out_dim]
    if isinstance(head, str):
        if head != "all":
            raise TypeError(f"Unknown head string {head!r}")
        head = list(range(n_heads))
    head = list(head)

    # One wide matmul over the cached all-heads weight; slice per requested
    # head afterwards (handles arbitrary subsets / orders without any per-call
    # concatenation or re-layout).
    w_all, b_all = prep_params["heads_all"]
    y = _fused_mlp_call(x, hidden, w_all, b_all)
    return tuple(y[:, h * out_dim:(h + 1) * out_dim] for h in head)


# ----------------------------------------------------------------------------
# Demo / correctness check
# ----------------------------------------------------------------------------
if __name__ == "__main__":
    batch, input_dim, hidden_dims, output_dim, n_heads = 8, 16, [32, 32], 8, 2

    key = jax.random.PRNGKey(0)
    key, kx, kx2 = jax.random.split(key, 3)
    x = jax.random.normal(kx, (batch, input_dim), jnp.float32)
    x_big = jax.random.normal(kx2, (20, input_dim), jnp.float32)  # multi-block grid

    pt_params = init_mlp_params(key, input_dim, hidden_dims, output_dim, n_heads)
    params = prepare_mlp_params(pt_params)   # one-time layout/dtype prep

    # Default (active) head, single int head, all heads, reordered subset.
    y = jax.block_until_ready(mlp_forward(params, x))
    y1 = jax.block_until_ready(mlp_forward(params, x, head=1))
    ys = jax.block_until_ready(mlp_forward(params, x, head="all"))
    ys_rev = jax.block_until_ready(mlp_forward(params, x, head=[1, 0]))
    y_big = jax.block_until_ready(mlp_forward(params, x_big))  # grid=(2,), partial block

    # --- References -----------------------------------------------------------
    # (a) bf16-matched reference: same dtypes/op order as the kernel.
    def ref_matched(xin, head_idx):
        h = xin
        for (w, b) in params["hidden"]:
            h = jnp.maximum(
                jnp.dot(h.astype(jnp.bfloat16), w,
                        preferred_element_type=jnp.float32) + b, 0.0)
        w, b = params["heads"][head_idx]
        out = jnp.dot(h.astype(jnp.bfloat16), w,
                      preferred_element_type=jnp.float32) + b
        return out[:, :output_dim]

    # (b) pure-f32 reference with original PyTorch-layout weights (sanity).
    def ref_f32(xin, head_idx):
        h = xin
        for (w, b) in pt_params["hidden"]:
            h = jnp.maximum(h @ w.T + b, 0.0)
        w, b = pt_params["heads"][head_idx]
        return h @ w.T + b

    assert y.shape == (batch, output_dim)
    assert len(ys) == n_heads and ys[0].shape == (batch, output_dim)
    assert y_big.shape == (20, output_dim)

    # Tight check vs. bf16-matched reference.
    assert jnp.allclose(y, ref_matched(x, 0), atol=1e-2, rtol=1e-2)
    assert jnp.allclose(y1, ref_matched(x, 1), atol=1e-2, rtol=1e-2)
    for h in range(n_heads):
        assert jnp.allclose(ys[h], ref_matched(x, h), atol=1e-2, rtol=1e-2)
    assert jnp.allclose(ys_rev[0], ref_matched(x, 1), atol=1e-2, rtol=1e-2)
    assert jnp.allclose(ys_rev[1], ref_matched(x, 0), atol=1e-2, rtol=1e-2)
    assert jnp.allclose(y_big, ref_matched(x_big, 0), atol=1e-2, rtol=1e-2)

    # Loose sanity check vs. full-f32 PyTorch-semantics reference.
    assert jnp.allclose(y, ref_f32(x, 0), atol=5e-2, rtol=5e-2)
    assert jnp.allclose(y_big, ref_f32(x_big, 0), atol=5e-2, rtol=5e-2)
    for h in range(n_heads):
        assert jnp.allclose(ys[h], ref_f32(x, h), atol=5e-2, rtol=5e-2)

    print("KERNEL_OK")
</pallas_src>

<mosaic_0001>
module attributes {stable_mosaic.version = 11 : i64} {
  func.func @_fused_mlp_kernel(%arg0: i32, %arg1: memref<8x16xf32, #tpu.memory_space<vmem>>, %arg2: memref<16x32xbf16, #tpu.memory_space<vmem>>, %arg3: memref<1x32xf32, #tpu.memory_space<vmem>>, %arg4: memref<32x32xbf16, #tpu.memory_space<vmem>>, %arg5: memref<1x32xf32, #tpu.memory_space<vmem>>, %arg6: memref<32x128xbf16, #tpu.memory_space<vmem>>, %arg7: memref<1x128xf32, #tpu.memory_space<vmem>>, %arg8: memref<8x128xf32, #tpu.memory_space<vmem>>) attributes {dimension_semantics = [#tpu.dimension_semantics<parallel>], iteration_bounds = array<i64: 1>, scalar_prefetch = 0 : i64, scratch_operands = 0 : i64, tpu.core_type = #tpu.core_type<tc>, window_params = [{transform_indices = @transform_0, window_bounds = array<i64: 8, 16>}, {pipeline_mode = #tpu.pipeline_mode<synchronous>, transform_indices = @transform_1, window_bounds = array<i64: 16, 32>}, {pipeline_mode = #tpu.pipeline_mode<synchronous>, transform_indices = @transform_2, window_bounds = array<i64: 1, 32>}, {pipeline_mode = #tpu.pipeline_mode<synchronous>, transform_indices = @transform_3, window_bounds = array<i64: 32, 32>}, {pipeline_mode = #tpu.pipeline_mode<synchronous>, transform_indices = @transform_4, window_bounds = array<i64: 1, 32>}, {pipeline_mode = #tpu.pipeline_mode<synchronous>, transform_indices = @transform_5, window_bounds = array<i64: 32, 128>}, {pipeline_mode = #tpu.pipeline_mode<synchronous>, transform_indices = @transform_6, window_bounds = array<i64: 1, 128>}, {transform_indices = @transform_7, window_bounds = array<i64: 8, 128>}]} {
    %c0 = arith.constant 0 : index
    %c0_0 = arith.constant 0 : index
    %0 = vector.load %arg1[%c0, %c0_0] : memref<8x16xf32, #tpu.memory_space<vmem>>, vector<8x16xf32>
    %c0_1 = arith.constant 0 : index
    %c0_2 = arith.constant 0 : index
    %1 = vector.load %arg2[%c0_1, %c0_2] : memref<16x32xbf16, #tpu.memory_space<vmem>>, vector<16x32xbf16>
    %c0_3 = arith.constant 0 : index
    %c0_4 = arith.constant 0 : index
    %2 = vector.load %arg3[%c0_3, %c0_4] : memref<1x32xf32, #tpu.memory_space<vmem>>, vector<1x32xf32>
    %3 = arith.truncf %0 : vector<8x16xf32> to vector<8x16xbf16>
    %cst = arith.constant dense<0.000000e+00> : vector<8x32xf32>
    %4 = tpu.matmul %3, %1, %cst {dimension_numbers = #tpu.dot_dimension_numbers<[1], [0], [0], [1], [0, 0, 1, 1], [], []>} : vector<8x16xbf16>, vector<16x32xbf16>, vector<8x32xf32> -> vector<8x32xf32>
    %5 = vector.broadcast %2 : vector<1x32xf32> to vector<8x32xf32>
    %6 = arith.addf %4, %5 : vector<8x32xf32>
    %cst_5 = arith.constant 0.000000e+00 : f32
    %7 = vector.broadcast %cst_5 : f32 to vector<8x32xf32>
    %8 = arith.maximumf %6, %7 : vector<8x32xf32>
    %c0_6 = arith.constant 0 : index
    %c0_7 = arith.constant 0 : index
    %9 = vector.load %arg4[%c0_6, %c0_7] : memref<32x32xbf16, #tpu.memory_space<vmem>>, vector<32x32xbf16>
    %c0_8 = arith.constant 0 : index
    %c0_9 = arith.constant 0 : index
    %10 = vector.load %arg5[%c0_8, %c0_9] : memref<1x32xf32, #tpu.memory_space<vmem>>, vector<1x32xf32>
    %11 = arith.truncf %8 : vector<8x32xf32> to vector<8x32xbf16>
    %cst_10 = arith.constant dense<0.000000e+00> : vector<8x32xf32>
    %12 = tpu.matmul %11, %9, %cst_10 {dimension_numbers = #tpu.dot_dimension_numbers<[1], [0], [0], [1], [0, 0, 1, 1], [], []>} : vector<8x32xbf16>, vector<32x32xbf16>, vector<8x32xf32> -> vector<8x32xf32>
    %13 = vector.broadcast %10 : vector<1x32xf32> to vector<8x32xf32>
    %14 = arith.addf %12, %13 : vector<8x32xf32>
    %cst_11 = arith.constant 0.000000e+00 : f32
    %15 = vector.broadcast %cst_11 : f32 to vector<8x32xf32>
    %16 = arith.maximumf %14, %15 : vector<8x32xf32>
    %c0_12 = arith.constant 0 : index
    %c0_13 = arith.constant 0 : index
    %17 = vector.load %arg6[%c0_12, %c0_13] : memref<32x128xbf16, #tpu.memory_space<vmem>>, vector<32x128xbf16>
    %c0_14 = arith.constant 0 : index
    %c0_15 = arith.constant 0 : index
    %18 = vector.load %arg7[%c0_14, %c0_15] : memref<1x128xf32, #tpu.memory_space<vmem>>, vector<1x128xf32>
    %19 = arith.truncf %16 : vector<8x32xf32> to vector<8x32xbf16>
    %cst_16 = arith.constant dense<0.000000e+00> : vector<8x128xf32>
    %20 = tpu.matmul %19, %17, %cst_16 {dimension_numbers = #tpu.dot_dimension_numbers<[1], [0], [0], [1], [0, 0, 1, 1], [], []>} : vector<8x32xbf16>, vector<32x128xbf16>, vector<8x128xf32> -> vector<8x128xf32>
    %21 = vector.broadcast %18 : vector<1x128xf32> to vector<8x128xf32>
    %22 = arith.addf %20, %21 : vector<8x128xf32>
    %c0_17 = arith.constant 0 : index
    %c0_18 = arith.constant 0 : index
    %23 = vector.load %arg8[%c0_17, %c0_18] : memref<8x128xf32, #tpu.memory_space<vmem>>, vector<8x128xf32>
    tpu.vector_store %arg8[%c0_17, %c0_18], %22 {strides = array<i32>} : memref<8x128xf32, #tpu.memory_space<vmem>>, vector<8x128xf32>,
    return
  }
  func.func @transform_0(%arg0: i32) -> (i32, i32) {
    %c0_i32 = arith.constant 0 : i32
    %c0_i32_0 = arith.constant 0 : i32
    return %arg0, %c0_i32 : i32, i32
  }
  func.func @transform_1(%arg0: i32) -> (i32, i32) {
    %c0_i32 = arith.constant 0 : i32
    %c0_i32_0 = arith.constant 0 : i32
    %c0_i32_1 = arith.constant 0 : i32
    return %c0_i32, %c0_i32_0 : i32, i32
  }
  func.func @transform_2(%arg0: i32) -> (i32, i32) {
    %c0_i32 = arith.constant 0 : i32
    %c0_i32_0 = arith.constant 0 : i32
    %c0_i32_1 = arith.constant 0 : i32
    return %c0_i32, %c0_i32_0 : i32, i32
  }
  func.func @transform_3(%arg0: i32) -> (i32, i32) {
    %c0_i32 = arith.constant 0 : i32
    %c0_i32_0 = arith.constant 0 : i32
    %c0_i32_1 = arith.constant 0 : i32
    return %c0_i32, %c0_i32_0 : i32, i32
  }
  func.func @transform_4(%arg0: i32) -> (i32, i32) {
    %c0_i32 = arith.constant 0 : i32
    %c0_i32_0 = arith.constant 0 : i32
    %c0_i32_1 = arith.constant 0 : i32
    return %c0_i32, %c0_i32_0 : i32, i32
  }
  func.func @transform_5(%arg0: i32) -> (i32, i32) {
    %c0_i32 = arith.constant 0 : i32
    %c0_i32_0 = arith.constant 0 : i32
    %c0_i32_1 = arith.constant 0 : i32
    return %c0_i32, %c0_i32_0 : i32, i32
  }
  func.func @transform_6(%arg0: i32) -> (i32, i32) {
    %c0_i32 = arith.constant 0 : i32
    %c0_i32_0 = arith.constant 0 : i32
    %c0_i32_1 = arith.constant 0 : i32
    return %c0_i32, %c0_i32_0 : i32, i32
  }
  func.func @transform_7(%arg0: i32) -> (i32, i32) {
    %c0_i32 = arith.constant 0 : i32
    %c0_i32_0 = arith.constant 0 : i32
    return %arg0, %c0_i32 : i32, i32
  }
}

module attributes {stable_mosaic.version = 11 : i64} {
  func.func @_fused_mlp_kernel(%arg0: i32, %arg1: memref<8x16xf32, #tpu.memory_space<vmem>>, %arg2: memref<16x32xbf16, #tpu.memory_space<vmem>>, %arg3: memref<1x32xf32, #tpu.memory_space<vmem>>, %arg4: memref<32x32xbf16, #tpu.memory_space<vmem>>, %arg5: memref<1x32xf32, #tpu.memory_space<vmem>>, %arg6: memref<32x128xbf16, #tpu.memory_space<vmem>>, %arg7: memref<1x128xf32, #tpu.memory_space<vmem>>, %arg8: memref<8x128xf32, #tpu.memory_space<vmem>>) attributes {dimension_semantics = [#tpu.dimension_semantics<parallel>], iteration_bounds = array<i64: 1>, scalar_prefetch = 0 : i64, scratch_operands = 0 : i64, tpu.core_type = #tpu.core_type<tc>, window_params = [{transform_indices = @transform_0, window_bounds = array<i64: 8, 16>}, {pipeline_mode = #tpu.pipeline_mode<synchronous>, transform_indices = @transform_1, window_bounds = array<i64: 16, 32>}, {pipeline_mode = #tpu.pipeline_mode<synchronous>, transform_indices = @transform_2, window_bounds = array<i64: 1, 32>}, {pipeline_mode = #tpu.pipeline_mode<synchronous>, transform_indices = @transform_3, window_bounds = array<i64: 32, 32>}, {pipeline_mode = #tpu.pipeline_mode<synchronous>, transform_indices = @transform_4, window_bounds = array<i64: 1, 32>}, {pipeline_mode = #tpu.pipeline_mode<synchronous>, transform_indices = @transform_5, window_bounds = array<i64: 32, 128>}, {pipeline_mode = #tpu.pipeline_mode<synchronous>, transform_indices = @transform_6, window_bounds = array<i64: 1, 128>}, {transform_indices = @transform_7, window_bounds = array<i64: 8, 128>}]} {
    %c0 = arith.constant 0 : index
    %c0_0 = arith.constant 0 : index
    %0 = vector.load %arg1[%c0, %c0_0] : memref<8x16xf32, #tpu.memory_space<vmem>>, vector<8x16xf32>
    %c0_1 = arith.constant 0 : index
    %c0_2 = arith.constant 0 : index
    %1 = vector.load %arg2[%c0_1, %c0_2] : memref<16x32xbf16, #tpu.memory_space<vmem>>, vector<16x32xbf16>
    %c0_3 = arith.constant 0 : index
    %c0_4 = arith.constant 0 : index
    %2 = vector.load %arg3[%c0_3, %c0_4] : memref<1x32xf32, #tpu.memory_space<vmem>>, vector<1x32xf32>
    %3 = arith.truncf %0 : vector<8x16xf32> to vector<8x16xbf16>
    %cst = arith.constant dense<0.000000e+00> : vector<8x32xf32>
    %4 = tpu.matmul %3, %1, %cst {dimension_numbers = #tpu.dot_dimension_numbers<[1], [0], [0], [1], [0, 0, 1, 1], [], []>} : vector<8x16xbf16>, vector<16x32xbf16>, vector<8x32xf32> -> vector<8x32xf32>
    %5 = vector.broadcast %2 : vector<1x32xf32> to vector<8x32xf32>
    %6 = arith.addf %4, %5 : vector<8x32xf32>
    %cst_5 = arith.constant 0.000000e+00 : f32
    %7 = vector.broadcast %cst_5 : f32 to vector<8x32xf32>
    %8 = arith.maximumf %6, %7 : vector<8x32xf32>
    %c0_6 = arith.constant 0 : index
    %c0_7 = arith.constant 0 : index
    %9 = vector.load %arg4[%c0_6, %c0_7] : memref<32x32xbf16, #tpu.memory_space<vmem>>, vector<32x32xbf16>
    %c0_8 = arith.constant 0 : index
    %c0_9 = arith.constant 0 : index
    %10 = vector.load %arg5[%c0_8, %c0_9] : memref<1x32xf32, #tpu.memory_space<vmem>>, vector<1x32xf32>
    %11 = arith.truncf %8 : vector<8x32xf32> to vector<8x32xbf16>
    %cst_10 = arith.constant dense<0.000000e+00> : vector<8x32xf32>
    %12 = tpu.matmul %11, %9, %cst_10 {dimension_numbers = #tpu.dot_dimension_numbers<[1], [0], [0], [1], [0, 0, 1, 1], [], []>} : vector<8x32xbf16>, vector<32x32xbf16>, vector<8x32xf32> -> vector<8x32xf32>
    %13 = vector.broadcast %10 : vector<1x32xf32> to vector<8x32xf32>
    %14 = arith.addf %12, %13 : vector<8x32xf32>
    %cst_11 = arith.constant 0.000000e+00 : f32
    %15 = vector.broadcast %cst_11 : f32 to vector<8x32xf32>
    %16 = arith.maximumf %14, %15 : vector<8x32xf32>
    %c0_12 = arith.constant 0 : index
    %c0_13 = arith.constant 0 : index
    %17 = vector.load %arg6[%c0_12, %c0_13] : memref<32x128xbf16, #tpu.memory_space<vmem>>, vector<32x128xbf16>
    %c0_14 = arith.constant 0 : index
    %c0_15 = arith.constant 0 : index
    %18 = vector.load %arg7[%c0_14, %c0_15] : memref<1x128xf32, #tpu.memory_space<vmem>>, vector<1x128xf32>
    %19 = arith.truncf %16 : vector<8x32xf32> to vector<8x32xbf16>
    %cst_16 = arith.constant dense<0.000000e+00> : vector<8x128xf32>
    %20 = tpu.matmul %19, %17, %cst_16 {dimension_numbers = #tpu.dot_dimension_numbers<[1], [0], [0], [1], [0, 0, 1, 1], [], []>} : vector<8x32xbf16>, vector<32x128xbf16>, vector<8x128xf32> -> vector<8x128xf32>
    %21 = vector.broadcast %18 : vector<1x128xf32> to vector<8x128xf32>
    %22 = arith.addf %20, %21 : vector<8x128xf32>
    %c0_17 = arith.constant 0 : index
    %c0_18 = arith.constant 0 : index
    %23 = vector.load %arg8[%c0_17, %c0_18] : memref<8x128xf32, #tpu.memory_space<vmem>>, vector<8x128xf32>
    tpu.vector_store %arg8[%c0_17, %c0_18], %22 {strides = array<i32>} : memref<8x128xf32, #tpu.memory_space<vmem>>, vector<8x128xf32>,
    return
  }
  func.func @transform_0(%arg0: i32) -> (i32, i32) {
    %c0_i32 = arith.constant 0 : i32
    %c0_i32_0 = arith.constant 0 : i32
    return %arg0, %c0_i32 : i32, i32
  }
  func.func @transform_1(%arg0: i32) -> (i32, i32) {
    %c0_i32 = arith.constant 0 : i32
    %c0_i32_0 = arith.constant 0 : i32
    %c0_i32_1 = arith.constant 0 : i32
    return %c0_i32, %c0_i32_0 : i32, i32
  }
  func.func @transform_2(%arg0: i32) -> (i32, i32) {
    %c0_i32 = arith.constant 0 : i32
    %c0_i32_0 = arith.constant 0 : i32
    %c0_i32_1 = arith.constant 0 : i32
    return %c0_i32, %c0_i32_0 : i32, i32
  }
  func.func @transform_3(%arg0: i32) -> (i32, i32) {
    %c0_i32 = arith.constant 0 : i32
    %c0_i32_0 = arith.constant 0 : i32
    %c0_i32_1 = arith.constant 0 : i32
    return %c0_i32, %c0_i32_0 : i32, i32
  }
  func.func @transform_4(%arg0: i32) -> (i32, i32) {
    %c0_i32 = arith.constant 0 : i32
    %c0_i32_0 = arith.constant 0 : i32
    %c0_i32_1 = arith.constant 0 : i32
    return %c0_i32, %c0_i32_0 : i32, i32
  }
  func.func @transform_5(%arg0: i32) -> (i32, i32) {
    %c0_i32 = arith.constant 0 : i32
    %c0_i32_0 = arith.constant 0 : i32
    %c0_i32_1 = arith.constant 0 : i32
    return %c0_i32, %c0_i32_0 : i32, i32
  }
  func.func @transform_6(%arg0: i32) -> (i32, i32) {
    %c0_i32 = arith.constant 0 : i32
    %c0_i32_0 = arith.constant 0 : i32
    %c0_i32_1 = arith.constant 0 : i32
    return %c0_i32, %c0_i32_0 : i32, i32
  }
  func.func @transform_7(%arg0: i32) -> (i32, i32) {
    %c0_i32 = arith.constant 0 : i32
    %c0_i32_0 = arith.constant 0 : i32
    return %arg0, %c0_i32 : i32, i32
  }
}

</mosaic_0001>

<llo_original>
// kernel: tpu_custom_call.1
$region0: #{tpu_custom_call.1}
  #allocation0 [shape = 'u32[]', space=smem, size = 0x4, offset = 0x4, fixed_abs, tag = 'smem constant byte address 0x4 - core index']
  #allocation1 [shape = 'u32[144,128]{1,0:T(1,128)}', space=vmem, size = 0x12000, scoped, tag = 'internal scratch']
  %s0 = inlined_call_operand.hbm [shape: f32[8,16], index: 0, kind: input, shape index: {}]
  %s1 = inlined_call_operand.hbm [shape: bf16[16,32], index: 1, kind: input, shape index: {}]
  %s2 = inlined_call_operand.vmem [shape: f32[1,32], index: 2, kind: input, shape index: {}]
  %s3 = inlined_call_operand.hbm [shape: bf16[32,32], index: 3, kind: input, shape index: {}]
  %s4 = inlined_call_operand.vmem [shape: f32[1,32], index: 4, kind: input, shape index: {}]
  %s5 = inlined_call_operand.hbm [shape: bf16[32,128], index: 5, kind: input, shape index: {}]
  %s6 = inlined_call_operand.vmem [shape: f32[1,128], index: 6, kind: input, shape index: {}]
  %s7 = inlined_call_operand.hbm [shape: f32[8,128], index: 7, kind: output, shape index: {}]
  %s8 = sld [smem:[#allocation0]]
  $region54: #{tpu_custom_call.1} parent=0
    _
  %s10 = ssub.s32 1, %s8
  %s11 = scalar_select 0, %s10, %s8
  $region1: #{tpu_custom_call.1} parent=0
    #allocation2 [shape = 'u8[4096]{0}', space=vmem, size = 0x1000, scoped, tag = 'input window, operand 0, single buffered']
    #allocation3 [shape = 's32[1]{0}', space=sflag, size = 0x4, scoped, tag = 'scoped memory for tpu_custom_call.1']
    #allocation4 [shape = 's32[1]{0}', space=sflag, size = 0x4, scoped, tag = 'scoped memory for tpu_custom_call.1']
    #allocation5 [shape = 'u8[4096]{0}', space=vmem, size = 0x1000, scoped, tag = 'input window, operand 1, single buffered']
    #allocation6 [shape = 's32[1]{0}', space=sflag, size = 0x4, scoped, tag = 'scoped memory for tpu_custom_call.1']
    #allocation7 [shape = 'u8[8192]{0}', space=vmem, size = 0x2000, scoped, tag = 'input window, operand 3, single buffered']
    #allocation8 [shape = 'u8[8192]{0}', space=vmem, size = 0x2000, scoped, tag = 'input window, operand 5, single buffered']
    #allocation9 [shape = 's32[1]{0}', space=sflag, size = 0x4, scoped, tag = 'scoped memory for tpu_custom_call.1']
    #allocation10 [shape = 'u8[4096]{0}', space=vmem, size = 0x1000, scoped, tag = 'output window, operand 0, single buffered']
    %12 = vsyncpa [#allocation3], 0
    %13 = vsyncpa [#allocation6], 0
    %14 = vsyncpa [#allocation9], 0
    %15 = vsyncpa [#allocation4], 0
    // Predicated region
    $region2: #{tpu_custom_call.1} parent=1 // pred_check
      _
    $region3: #{tpu_custom_call.1} parent=1 // pred_check_branch
      %17 = sbr.rel (0) target = $region5
    $region4: #{tpu_custom_call.1} parent=1 // pred_region
      %s19 = ssub.s32 128, 128
      %20 = vsyncadd [#allocation3], %s19
      %s22 = sshll.u32 [#allocation2], 4
      %s23 = int_to_ptr.vmem [resolvable:$true] %s22
      %25 = dma.hbm_to_vmem [thread:$0]  %s0, 128, %s23, [#allocation3]
    $region5: #{tpu_custom_call.1} parent=1 // pred_fallthru
      _
    // Predicated region
    $region6: #{tpu_custom_call.1} parent=1 // pred_check
      _
    $region7: #{tpu_custom_call.1} parent=1 // pred_check_branch
      %27 = sbr.rel (0) target = $region9
    $region8: #{tpu_custom_call.1} parent=1 // pred_region
      %s29 = ssub.s32 128, 128
      %30 = vsyncadd [#allocation6], %s29
      %s31 = sshll.u32 [#allocation5], 4
      %s32 = int_to_ptr.vmem [resolvable:$true] %s31
      %37 = dma.hbm_to_vmem [thread:$0]  %s1, 128, %s32, [#allocation6], 64, 64, 4
    $region9: #{tpu_custom_call.1} parent=1 // pred_fallthru
      _
    // Predicated region
    $region10: #{tpu_custom_call.1} parent=1 // pred_check
      _
    $region11: #{tpu_custom_call.1} parent=1 // pred_check_branch
      %39 = sbr.rel (0) target = $region13
    $region12: #{tpu_custom_call.1} parent=1 // pred_region
      _
    $region13: #{tpu_custom_call.1} parent=1 // pred_fallthru
      _
    // Predicated region
    $region14: #{tpu_custom_call.1} parent=1 // pred_check
      _
    $region15: #{tpu_custom_call.1} parent=1 // pred_check_branch
      %41 = sbr.rel (0) target = $region17
    $region16: #{tpu_custom_call.1} parent=1 // pred_region
      %s43 = ssub.s32 256, 256
      %44 = vsyncadd [#allocation6], %s43
      %s45 = sshll.u32 [#allocation7], 4
      %s46 = int_to_ptr.vmem [resolvable:$true] %s45
      %51 = dma.hbm_to_vmem [thread:$0]  %s3, 256, %s46, [#allocation6], 64, 64, 4
    $region17: #{tpu_custom_call.1} parent=1 // pred_fallthru
      _
    // Predicated region
    $region18: #{tpu_custom_call.1} parent=1 // pred_check
      _
    $region19: #{tpu_custom_call.1} parent=1 // pred_check_branch
      %53 = sbr.rel (0) target = $region21
    $region20: #{tpu_custom_call.1} parent=1 // pred_region
      _
    $region21: #{tpu_custom_call.1} parent=1 // pred_fallthru
      _
    // Predicated region
    $region22: #{tpu_custom_call.1} parent=1 // pred_check
      _
    $region23: #{tpu_custom_call.1} parent=1 // pred_check_branch
      %55 = sbr.rel (0) target = $region25
    $region24: #{tpu_custom_call.1} parent=1 // pred_region
      %s57 = ssub.s32 256, 256
      %58 = vsyncadd [#allocation9], %s57
      %s59 = sshll.u32 [#allocation8], 4
      %s60 = int_to_ptr.vmem [resolvable:$true] %s59
      %65 = dma.hbm_to_vmem [thread:$0]  %s5, 256, %s60, [#allocation9], 64, 64, 4
    $region25: #{tpu_custom_call.1} parent=1 // pred_fallthru
      _
    // Predicated region
    $region26: #{tpu_custom_call.1} parent=1 // pred_check
      _
    $region27: #{tpu_custom_call.1} parent=1 // pred_check_branch
      %67 = sbr.rel (0) target = $region29
    $region28: #{tpu_custom_call.1} parent=1 // pred_region
      _
    $region29: #{tpu_custom_call.1} parent=1 // pred_fallthru
      _
    // Predicated region
    $region30: #{tpu_custom_call.1} parent=1 // pred_check
      _
    $region31: #{tpu_custom_call.1} parent=1 // pred_check_branch
      %69 = sbr.rel (0) target = $region33
    $region32: #{tpu_custom_call.1} parent=1 // pred_region
      %70 = dma.done [#allocation3], 128
    $region33: #{tpu_custom_call.1} parent=1 // pred_fallthru
      _
    // Predicated region
    $region34: #{tpu_custom_call.1} parent=1 // pred_check
      _
    $region35: #{tpu_custom_call.1} parent=1 // pred_check_branch
      %72 = sbr.rel (0) target = $region37
    $region36: #{tpu_custom_call.1} parent=1 // pred_region
      %73 = dma.done [#allocation6], 128
    $region37: #{tpu_custom_call.1} parent=1 // pred_fallthru
      _
    // Predicated region
    $region38: #{tpu_custom_call.1} parent=1 // pred_check
      _
    $region39: #{tpu_custom_call.1} parent=1 // pred_check_branch
      %75 = sbr.rel (0) target = $region41
    $region40: #{tpu_custom_call.1} parent=1 // pred_region
      %76 = dma.done [#allocation6], 256
    $region41: #{tpu_custom_call.1} parent=1 // pred_fallthru
      _
    // Predicated region
    $region42: #{tpu_custom_call.1} parent=1 // pred_check
      _
    $region43: #{tpu_custom_call.1} parent=1 // pred_check_branch
      %78 = sbr.rel (0) target = $region45
    $region44: #{tpu_custom_call.1} parent=1 // pred_region
      %79 = dma.done [#allocation9], 256
    $region45: #{tpu_custom_call.1} parent=1 // pred_fallthru
      _
    %v81 = vld [vmem:[#allocation2] sm:$0xff]
    %v82 = vld [vmem:[#allocation5] sm:$0xf]
    %v83 = vld [vmem:[#allocation5 + $0x4] sm:$0xf]
    %v84 = vld [vmem:[%s2] sm:$0x1]
    %v85 = vpack.c.bf16 %v81, %v81
    %v87 = vlaneseq
    %v88 = vshrl.u32 %v87, 7
    %v89 = vsub.s32 0, %v88
    %v90 = vrot.slane %v84, %v89
    %v94 = vunpack.c.l.b16 %v82
    %v95 = vunpack.c.l.b16 %v83
    %v96 = vpack.c.b16 %v95, %v94
    %vm98 = vcmask 130048
    %v100 = vsel %vm98, %v85, 0
    %102 = vmatprep.subr.bf16.mxu0 0
    %103 = vmatpush1.bf16.msra.mxu0 0
    %104 = vmatprep.subr.bf16.mxu0 0
    %105 = vmatpush1.bf16.msra.mxu0 0
    %106 = vmatprep.subr.bf16.mxu0 0
    %107 = vmatpush1.bf16.msra.mxu0 0
    %108 = vmatprep.subr.bf16.mxu0 0
    %109 = vmatpush1.bf16.msra.mxu0 0
    %110 = vmatprep.subr.bf16.mxu0 0
    %111 = vmatpush1.bf16.msra.mxu0 0
    %112 = vmatprep.subr.bf16.mxu0 0
    %113 = vmatpush1.bf16.msra.mxu0 0
    %114 = vmatprep.subr.bf16.mxu0 0
    %115 = vmatpush1.bf16.msra.mxu0 0
    %116 = vmatprep.subr.bf16.mxu0 0
    %117 = vmatpush1.bf16.msra.mxu0 %v96
    %118 = vmatprep.subr.bf16.mxu0 0
    %119 = vmatpush2.bf16.msra.mxu0 0
    %120 = vmatprep.subr.bf16.mxu0 0
    %121 = vmatpush2.bf16.msra.mxu0 0
    %122 = vmatprep.subr.bf16.mxu0 0
    %123 = vmatpush2.bf16.msra.mxu0 0
    %124 = vmatprep.subr.bf16.mxu0 0
    %125 = vmatpush2.bf16.msra.mxu0 0
    %126 = vmatprep.subr.bf16.mxu0 0
    %127 = vmatpush2.bf16.msra.mxu0 0
    %128 = vmatprep.subr.bf16.mxu0 0
    %129 = vmatpush2.bf16.msra.mxu0 0
    %130 = vmatprep.subr.bf16.mxu0 0
    %131 = vmatpush2.bf16.msra.mxu0 0
    %132 = vmatprep.subr.bf16.mxu0 0
    %133 = vmatpush2.bf16.msra.mxu0 0
    %134 = vmatprep.mubr.bf16.mxu0 0
    %135 = vmatmul.mubr.bf16.gmra.mxu0 %v100
    %v136 = vpop.f32.mrf.mxu0
    %v137 = vadd.f32 %v90, %v136
    %v138 = vpop.f32.mrf.mxu0
    %v139 = vpop.f32.mrf.mxu0
    %v140 = vpop.f32.mrf.mxu0
    %141 = vdwg.mxu0
    %v142 = vmax.f32 %v137, 0.0
    %v143 = vld [vmem:[#allocation7] sm:$0xf]
    %v144 = vld [vmem:[#allocation7 + $0x4] sm:$0xf]
    %v145 = vld [vmem:[#allocation7 + $0x8] sm:$0xf]
    %v146 = vld [vmem:[#allocation7 + $0xc] sm:$0xf]
    %v147 = vld [vmem:[%s4] sm:$0x1]
    %v148 = vpack.c.bf16 %v142, %v142
    %v150 = vlaneseq
    %v151 = vshrl.u32 %v150, 7
    %v152 = vsub.s32 0, %v151
    %v153 = vrot.slane %v147, %v152
    %v159 = vunpack.c.l.b16 %v143
    %v160 = vunpack.c.l.b16 %v144
    %v161 = vunpack.c.l.b16 %v145
    %v162 = vunpack.c.l.b16 %v146
    %v163 = vpack.c.b16 %v160, %v159
    %v164 = vpack.c.b16 %v162, %v161
    %vm167 = vcmask 261120
    %v169 = vsel %vm167, %v148, 0
    %171 = vmatprep.subr.bf16.mxu0 0
    %172 = vmatpush1.bf16.msra.mxu0 0
    %173 = vmatprep.subr.bf16.mxu0 0
    %174 = vmatpush1.bf16.msra.mxu0 0
    %175 = vmatprep.subr.bf16.mxu0 0
    %176 = vmatpush1.bf16.msra.mxu0 0
    %177 = vmatprep.subr.bf16.mxu0 0
    %178 = vmatpush1.bf16.msra.mxu0 0
    %179 = vmatprep.subr.bf16.mxu0 0
    %180 = vmatpush1.bf16.msra.mxu0 0
    %181 = vmatprep.subr.bf16.mxu0 0
    %182 = vmatpush1.bf16.msra.mxu0 0
    %183 = vmatprep.subr.bf16.mxu0 0
    %184 = vmatpush1.bf16.msra.mxu0 %v164
    %185 = vmatprep.subr.bf16.mxu0 0
    %186 = vmatpush1.bf16.msra.mxu0 %v163
    %187 = vmatprep.subr.bf16.mxu0 0
    %188 = vmatpush2.bf16.msra.mxu0 0
    %189 = vmatprep.subr.bf16.mxu0 0
    %190 = vmatpush2.bf16.msra.mxu0 0
    %191 = vmatprep.subr.bf16.mxu0 0
    %192 = vmatpush2.bf16.msra.mxu0 0
    %193 = vmatprep.subr.bf16.mxu0 0
    %194 = vmatpush2.bf16.msra.mxu0 0
    %195 = vmatprep.subr.bf16.mxu0 0
    %196 = vmatpush2.bf16.msra.mxu0 0
    %197 = vmatprep.subr.bf16.mxu0 0
    %198 = vmatpush2.bf16.msra.mxu0 0
    %199 = vmatprep.subr.bf16.mxu0 0
    %200 = vmatpush2.bf16.msra.mxu0 0
    %201 = vmatprep.subr.bf16.mxu0 0
    %202 = vmatpush2.bf16.msra.mxu0 0
    %203 = vmatprep.mubr.bf16.mxu0 0
    %204 = vmatmul.mubr.bf16.gmra.mxu0 %v169
    %v205 = vpop.f32.mrf.mxu0
    %v206 = vadd.f32 %v153, %v205
    %v207 = vpop.f32.mrf.mxu0
    %v208 = vpop.f32.mrf.mxu0
    %v209 = vpop.f32.mrf.mxu0
    %210 = vdwg.mxu0
    %v211 = vmax.f32 %v206, 0.0
    %v212 = vld [vmem:[#allocation8] sm:$0xf]
    %v213 = vld [vmem:[#allocation8 + $0x4] sm:$0xf]
    %v214 = vld [vmem:[#allocation8 + $0x8] sm:$0xf]
    %v215 = vld [vmem:[#allocation8 + $0xc] sm:$0xf]
    %v216 = vld [vmem:[%s6] sm:$0x1]
    %v217 = vpack.c.bf16 %v211, %v211
    %v219 = vlaneseq
    %v220 = vshrl.u32 %v219, 7
    %v221 = vsub.s32 0, %v220
    %v222 = vrot.slane %v216, %v221
    %v228 = vunpack.c.l.b16 %v212
    %v229 = vunpack.c.l.b16 %v213
    %v230 = vunpack.c.l.b16 %v214
    %v231 = vunpack.c.l.b16 %v215
    %v232 = vpack.c.b16 %v229, %v228
    %v233 = vpack.c.b16 %v231, %v230
    %v237 = vsel %vm167, %v217, 0
    %239 = vmatprep.subr.bf16.mxu0 0
    %240 = vmatpush1.bf16.msra.mxu0 0
    %241 = vmatprep.subr.bf16.mxu0 0
    %242 = vmatpush1.bf16.msra.mxu0 0
    %243 = vmatprep.subr.bf16.mxu0 0
    %244 = vmatpush1.bf16.msra.mxu0 0
    %245 = vmatprep.subr.bf16.mxu0 0
    %246 = vmatpush1.bf16.msra.mxu0 0
    %247 = vmatprep.subr.bf16.mxu0 0
    %248 = vmatpush1.bf16.msra.mxu0 0
    %249 = vmatprep.subr.bf16.mxu0 0
    %250 = vmatpush1.bf16.msra.mxu0 0
    %251 = vmatprep.subr.bf16.mxu0 0
    %252 = vmatpush1.bf16.msra.mxu0 %v233
    %253 = vmatprep.subr.bf16.mxu0 0
    %254 = vmatpush1.bf16.msra.mxu0 %v232
    %255 = vmatprep.subr.bf16.mxu0 0
    %256 = vmatpush2.bf16.msra.mxu0 0
    %257 = vmatprep.subr.bf16.mxu0 0
    %258 = vmatpush2.bf16.msra.mxu0 0
    %259 = vmatprep.subr.bf16.mxu0 0
    %260 = vmatpush2.bf16.msra.mxu0 0
    %261 = vmatprep.subr.bf16.mxu0 0
    %262 = vmatpush2.bf16.msra.mxu0 0
    %263 = vmatprep.subr.bf16.mxu0 0
    %264 = vmatpush2.bf16.msra.mxu0 0
    %265 = vmatprep.subr.bf16.mxu0 0
    %266 = vmatpush2.bf16.msra.mxu0 0
    %267 = vmatprep.subr.bf16.mxu0 0
    %268 = vmatpush2.bf16.msra.mxu0 0
    %269 = vmatprep.subr.bf16.mxu0 0
    %270 = vmatpush2.bf16.msra.mxu0 0
    %271 = vmatprep.mubr.bf16.mxu0 0
    %272 = vmatmul.mubr.bf16.gmra.mxu0 %v237
    %v273 = vpop.f32.mrf.mxu0
    %v274 = vadd.f32 %v222, %v273
    %v275 = vpop.f32.mrf.mxu0
    %v276 = vpop.f32.mrf.mxu0
    %v277 = vpop.f32.mrf.mxu0
    %278 = vdwg.mxu0
    %279 = vst [vmem:[#allocation10] sm:$0xff] %v274
    // Predicated region
    $region46: #{tpu_custom_call.1} parent=1 // pred_check
      _
    $region47: #{tpu_custom_call.1} parent=1 // pred_check_branch
      %281 = sbr.rel (0) target = $region49
    $region48: #{tpu_custom_call.1} parent=1 // pred_region
      %s283 = ssub.s32 128, 128
      %284 = vsyncadd [#allocation4], %s283
      %s286 = sshll.u32 [#allocation10], 4
      %s287 = int_to_ptr.vmem [resolvable:$true] %s286
      %289 = dma.vmem_to_hbm [thread:$0]  %s287, 128, %s7, [#allocation4]
    $region49: #{tpu_custom_call.1} parent=1 // pred_fallthru
      _
    // Predicated region
    $region50: #{tpu_custom_call.1} parent=1 // pred_check
      _
    $region51: #{tpu_custom_call.1} parent=1 // pred_check_branch
      %291 = sbr.rel (0) target = $region53
    $region52: #{tpu_custom_call.1} parent=1 // pred_region
      %292 = dma.done [#allocation4], 128
    $region53: #{tpu_custom_call.1} parent=1 // pred_fallthru
      _
    %293 = vsyncpa [#allocation3], 1
    %294 = vsyncpa [#allocation6], 1
    %295 = vsyncpa [#allocation9], 1
    %296 = vsyncpa [#allocation4], 1

// kernel: tpu_custom_call.1
$region0: #{tpu_custom_call.1}
  #allocation0 [shape = 'u32[]', space=smem, size = 0x4, offset = 0x4, fixed_abs, tag = 'smem constant byte address 0x4 - core index']
  #allocation1 [shape = 'u32[144,128]{1,0:T(1,128)}', space=vmem, size = 0x12000, scoped, tag = 'internal scratch']
  %s0 = inlined_call_operand.hbm [shape: f32[8,16], index: 0, kind: input, shape index: {}]
  %s1 = inlined_call_operand.hbm [shape: bf16[16,32], index: 1, kind: input, shape index: {}]
  %s2 = inlined_call_operand.vmem [shape: f32[1,32], index: 2, kind: input, shape index: {}]
  %s3 = inlined_call_operand.hbm [shape: bf16[32,32], index: 3, kind: input, shape index: {}]
  %s4 = inlined_call_operand.vmem [shape: f32[1,32], index: 4, kind: input, shape index: {}]
  %s5 = inlined_call_operand.hbm [shape: bf16[32,128], index: 5, kind: input, shape index: {}]
  %s6 = inlined_call_operand.vmem [shape: f32[1,128], index: 6, kind: input, shape index: {}]
  %s7 = inlined_call_operand.hbm [shape: f32[8,128], index: 7, kind: output, shape index: {}]
  %s8 = sld [smem:[#allocation0]]
  $region54: #{tpu_custom_call.1} parent=0
    _
  %s10 = ssub.s32 1, %s8
  %s11 = scalar_select 0, %s10, %s8
  $region1: #{tpu_custom_call.1} parent=0
    #allocation2 [shape = 'u8[4096]{0}', space=vmem, size = 0x1000, scoped, tag = 'input window, operand 0, single buffered']
    #allocation3 [shape = 's32[1]{0}', space=sflag, size = 0x4, scoped, tag = 'scoped memory for tpu_custom_call.1']
    #allocation4 [shape = 's32[1]{0}', space=sflag, size = 0x4, scoped, tag = 'scoped memory for tpu_custom_call.1']
    #allocation5 [shape = 'u8[4096]{0}', space=vmem, size = 0x1000, scoped, tag = 'input window, operand 1, single buffered']
    #allocation6 [shape = 's32[1]{0}', space=sflag, size = 0x4, scoped, tag = 'scoped memory for tpu_custom_call.1']
    #allocation7 [shape = 'u8[8192]{0}', space=vmem, size = 0x2000, scoped, tag = 'input window, operand 3, single buffered']
    #allocation8 [shape = 'u8[8192]{0}', space=vmem, size = 0x2000, scoped, tag = 'input window, operand 5, single buffered']
    #allocation9 [shape = 's32[1]{0}', space=sflag, size = 0x4, scoped, tag = 'scoped memory for tpu_custom_call.1']
    #allocation10 [shape = 'u8[4096]{0}', space=vmem, size = 0x1000, scoped, tag = 'output window, operand 0, single buffered']
    %12 = vsyncpa [#allocation3], 0
    %13 = vsyncpa [#allocation6], 0
    %14 = vsyncpa [#allocation9], 0
    %15 = vsyncpa [#allocation4], 0
    // Predicated region
    $region2: #{tpu_custom_call.1} parent=1 // pred_check
      _
    $region3: #{tpu_custom_call.1} parent=1 // pred_check_branch
      %17 = sbr.rel (0) target = $region5
    $region4: #{tpu_custom_call.1} parent=1 // pred_region
      %s19 = ssub.s32 128, 128
      %20 = vsyncadd [#allocation3], %s19
      %s22 = sshll.u32 [#allocation2], 4
      %s23 = int_to_ptr.vmem [resolvable:$true] %s22
      %25 = dma.hbm_to_vmem [thread:$0]  %s0, 128, %s23, [#allocation3]
    $region5: #{tpu_custom_call.1} parent=1 // pred_fallthru
      _
    // Predicated region
    $region6: #{tpu_custom_call.1} parent=1 // pred_check
      _
    $region7: #{tpu_custom_call.1} parent=1 // pred_check_branch
      %27 = sbr.rel (0) target = $region9
    $region8: #{tpu_custom_call.1} parent=1 // pred_region
      %s29 = ssub.s32 128, 128
      %30 = vsyncadd [#allocation6], %s29
      %s31 = sshll.u32 [#allocation5], 4
      %s32 = int_to_ptr.vmem [resolvable:$true] %s31
      %37 = dma.hbm_to_vmem [thread:$0]  %s1, 128, %s32, [#allocation6], 64, 64, 4
    $region9: #{tpu_custom_call.1} parent=1 // pred_fallthru
      _
    // Predicated region
    $region10: #{tpu_custom_call.1} parent=1 // pred_check
      _
    $region11: #{tpu_custom_call.1} parent=1 // pred_check_branch
      %39 = sbr.rel (0) target = $region13
    $region12: #{tpu_custom_call.1} parent=1 // pred_region
      _
    $region13: #{tpu_custom_call.1} parent=1 // pred_fallthru
      _
    // Predicated region
    $region14: #{tpu_custom_call.1} parent=1 // pred_check
      _
    $region15: #{tpu_custom_call.1} parent=1 // pred_check_branch
      %41 = sbr.rel (0) target = $region17
    $region16: #{tpu_custom_call.1} parent=1 // pred_region
      %s43 = ssub.s32 256, 256
      %44 = vsyncadd [#allocation6], %s43
      %s45 = sshll.u32 [#allocation7], 4
      %s46 = int_to_ptr.vmem [resolvable:$true] %s45
      %51 = dma.hbm_to_vmem [thread:$0]  %s3, 256, %s46, [#allocation6], 64, 64, 4
    $region17: #{tpu_custom_call.1} parent=1 // pred_fallthru
      _
    // Predicated region
    $region18: #{tpu_custom_call.1} parent=1 // pred_check
      _
    $region19: #{tpu_custom_call.1} parent=1 // pred_check_branch
      %53 = sbr.rel (0) target = $region21
    $region20: #{tpu_custom_call.1} parent=1 // pred_region
      _
    $region21: #{tpu_custom_call.1} parent=1 // pred_fallthru
      _
    // Predicated region
    $region22: #{tpu_custom_call.1} parent=1 // pred_check
      _
    $region23: #{tpu_custom_call.1} parent=1 // pred_check_branch
      %55 = sbr.rel (0) target = $region25
    $region24: #{tpu_custom_call.1} parent=1 // pred_region
      %s57 = ssub.s32 256, 256
      %58 = vsyncadd [#allocation9], %s57
      %s59 = sshll.u32 [#allocation8], 4
      %s60 = int_to_ptr.vmem [resolvable:$true] %s59
      %65 = dma.hbm_to_vmem [thread:$0]  %s5, 256, %s60, [#allocation9], 64, 64, 4
    $region25: #{tpu_custom_call.1} parent=1 // pred_fallthru
      _
    // Predicated region
    $region26: #{tpu_custom_call.1} parent=1 // pred_check
      _
    $region27: #{tpu_custom_call.1} parent=1 // pred_check_branch
      %67 = sbr.rel (0) target = $region29
    $region28: #{tpu_custom_call.1} parent=1 // pred_region
      _
    $region29: #{tpu_custom_call.1} parent=1 // pred_fallthru
      _
    // Predicated region
    $region30: #{tpu_custom_call.1} parent=1 // pred_check
      _
    $region31: #{tpu_custom_call.1} parent=1 // pred_check_branch
      %69 = sbr.rel (0) target = $region33
    $region32: #{tpu_custom_call.1} parent=1 // pred_region
      %70 = dma.done [#allocation3], 128
    $region33: #{tpu_custom_call.1} parent=1 // pred_fallthru
      _
    // Predicated region
    $region34: #{tpu_custom_call.1} parent=1 // pred_check
      _
    $region35: #{tpu_custom_call.1} parent=1 // pred_check_branch
      %72 = sbr.rel (0) target = $region37
    $region36: #{tpu_custom_call.1} parent=1 // pred_region
      %73 = dma.done [#allocation6], 128
    $region37: #{tpu_custom_call.1} parent=1 // pred_fallthru
      _
    // Predicated region
    $region38: #{tpu_custom_call.1} parent=1 // pred_check
      _
    $region39: #{tpu_custom_call.1} parent=1 // pred_check_branch
      %75 = sbr.rel (0) target = $region41
    $region40: #{tpu_custom_call.1} parent=1 // pred_region
      %76 = dma.done [#allocation6], 256
    $region41: #{tpu_custom_call.1} parent=1 // pred_fallthru
      _
    // Predicated region
    $region42: #{tpu_custom_call.1} parent=1 // pred_check
      _
    $region43: #{tpu_custom_call.1} parent=1 // pred_check_branch
      %78 = sbr.rel (0) target = $region45
    $region44: #{tpu_custom_call.1} parent=1 // pred_region
      %79 = dma.done [#allocation9], 256
    $region45: #{tpu_custom_call.1} parent=1 // pred_fallthru
      _
    %v81 = vld [vmem:[#allocation2] sm:$0xff]
    %v82 = vld [vmem:[#allocation5] sm:$0xf]
    %v83 = vld [vmem:[#allocation5 + $0x4] sm:$0xf]
    %v84 = vld [vmem:[%s2] sm:$0x1]
    %v85 = vpack.c.bf16 %v81, %v81
    %v87 = vlaneseq
    %v88 = vshrl.u32 %v87, 7
    %v89 = vsub.s32 0, %v88
    %v90 = vrot.slane %v84, %v89
    %v94 = vunpack.c.l.b16 %v82
    %v95 = vunpack.c.l.b16 %v83
    %v96 = vpack.c.b16 %v95, %v94
    %vm98 = vcmask 130048
    %v100 = vsel %vm98, %v85, 0
    %102 = vmatprep.subr.bf16.mxu0 0
    %103 = vmatpush1.bf16.msra.mxu0 0
    %104 = vmatprep.subr.bf16.mxu0 0
    %105 = vmatpush1.bf16.msra.mxu0 0
    %106 = vmatprep.subr.bf16.mxu0 0
    %107 = vmatpush1.bf16.msra.mxu0 0
    %108 = vmatprep.subr.bf16.mxu0 0
    %109 = vmatpush1.bf16.msra.mxu0 0
    %110 = vmatprep.subr.bf16.mxu0 0
    %111 = vmatpush1.bf16.msra.mxu0 0
    %112 = vmatprep.subr.bf16.mxu0 0
    %113 = vmatpush1.bf16.msra.mxu0 0
    %114 = vmatprep.subr.bf16.mxu0 0
    %115 = vmatpush1.bf16.msra.mxu0 0
    %116 = vmatprep.subr.bf16.mxu0 0
    %117 = vmatpush1.bf16.msra.mxu0 %v96
    %118 = vmatprep.subr.bf16.mxu0 0
    %119 = vmatpush2.bf16.msra.mxu0 0
    %120 = vmatprep.subr.bf16.mxu0 0
    %121 = vmatpush2.bf16.msra.mxu0 0
    %122 = vmatprep.subr.bf16.mxu0 0
    %123 = vmatpush2.bf16.msra.mxu0 0
    %124 = vmatprep.subr.bf16.mxu0 0
    %125 = vmatpush2.bf16.msra.mxu0 0
    %126 = vmatprep.subr.bf16.mxu0 0
    %127 = vmatpush2.bf16.msra.mxu0 0
    %128 = vmatprep.subr.bf16.mxu0 0
    %129 = vmatpush2.bf16.msra.mxu0 0
    %130 = vmatprep.subr.bf16.mxu0 0
    %131 = vmatpush2.bf16.msra.mxu0 0
    %132 = vmatprep.subr.bf16.mxu0 0
    %133 = vmatpush2.bf16.msra.mxu0 0
    %134 = vmatprep.mubr.bf16.mxu0 0
    %135 = vmatmul.mubr.bf16.gmra.mxu0 %v100
    %v136 = vpop.f32.mrf.mxu0
    %v137 = vadd.f32 %v90, %v136
    %v138 = vpop.f32.mrf.mxu0
    %v139 = vpop.f32.mrf.mxu0
    %v140 = vpop.f32.mrf.mxu0
    %141 = vdwg.mxu0
    %v142 = vmax.f32 %v137, 0.0
    %v143 = vld [vmem:[#allocation7] sm:$0xf]
    %v144 = vld [vmem:[#allocation7 + $0x4] sm:$0xf]
    %v145 = vld [vmem:[#allocation7 + $0x8] sm:$0xf]
    %v146 = vld [vmem:[#allocation7 + $0xc] sm:$0xf]
    %v147 = vld [vmem:[%s4] sm:$0x1]
    %v148 = vpack.c.bf16 %v142, %v142
    %v150 = vlaneseq
    %v151 = vshrl.u32 %v150, 7
    %v152 = vsub.s32 0, %v151
    %v153 = vrot.slane %v147, %v152
    %v159 = vunpack.c.l.b16 %v143
    %v160 = vunpack.c.l.b16 %v144
    %v161 = vunpack.c.l.b16 %v145
    %v162 = vunpack.c.l.b16 %v146
    %v163 = vpack.c.b16 %v160, %v159
    %v164 = vpack.c.b16 %v162, %v161
    %vm167 = vcmask 261120
    %v169 = vsel %vm167, %v148, 0
    %171 = vmatprep.subr.bf16.mxu0 0
    %172 = vmatpush1.bf16.msra.mxu0 0
    %173 = vmatprep.subr.bf16.mxu0 0
    %174 = vmatpush1.bf16.msra.mxu0 0
    %175 = vmatprep.subr.bf16.mxu0 0
    %176 = vmatpush1.bf16.msra.mxu0 0
    %177 = vmatprep.subr.bf16.mxu0 0
    %178 = vmatpush1.bf16.msra.mxu0 0
    %179 = vmatprep.subr.bf16.mxu0 0
    %180 = vmatpush1.bf16.msra.mxu0 0
    %181 = vmatprep.subr.bf16.mxu0 0
    %182 = vmatpush1.bf16.msra.mxu0 0
    %183 = vmatprep.subr.bf16.mxu0 0
    %184 = vmatpush1.bf16.msra.mxu0 %v164
    %185 = vmatprep.subr.bf16.mxu0 0
    %186 = vmatpush1.bf16.msra.mxu0 %v163
    %187 = vmatprep.subr.bf16.mxu0 0
    %188 = vmatpush2.bf16.msra.mxu0 0
    %189 = vmatprep.subr.bf16.mxu0 0
    %190 = vmatpush2.bf16.msra.mxu0 0
    %191 = vmatprep.subr.bf16.mxu0 0
    %192 = vmatpush2.bf16.msra.mxu0 0
    %193 = vmatprep.subr.bf16.mxu0 0
    %194 = vmatpush2.bf16.msra.mxu0 0
    %195 = vmatprep.subr.bf16.mxu0 0
    %196 = vmatpush2.bf16.msra.mxu0 0
    %197 = vmatprep.subr.bf16.mxu0 0
    %198 = vmatpush2.bf16.msra.mxu0 0
    %199 = vmatprep.subr.bf16.mxu0 0
    %200 = vmatpush2.bf16.msra.mxu0 0
    %201 = vmatprep.subr.bf16.mxu0 0
    %202 = vmatpush2.bf16.msra.mxu0 0
    %203 = vmatprep.mubr.bf16.mxu0 0
    %204 = vmatmul.mubr.bf16.gmra.mxu0 %v169
    %v205 = vpop.f32.mrf.mxu0
    %v206 = vadd.f32 %v153, %v205
    %v207 = vpop.f32.mrf.mxu0
    %v208 = vpop.f32.mrf.mxu0
    %v209 = vpop.f32.mrf.mxu0
    %210 = vdwg.mxu0
    %v211 = vmax.f32 %v206, 0.0
    %v212 = vld [vmem:[#allocation8] sm:$0xf]
    %v213 = vld [vmem:[#allocation8 + $0x4] sm:$0xf]
    %v214 = vld [vmem:[#allocation8 + $0x8] sm:$0xf]
    %v215 = vld [vmem:[#allocation8 + $0xc] sm:$0xf]
    %v216 = vld [vmem:[%s6] sm:$0x1]
    %v217 = vpack.c.bf16 %v211, %v211
    %v219 = vlaneseq
    %v220 = vshrl.u32 %v219, 7
    %v221 = vsub.s32 0, %v220
    %v222 = vrot.slane %v216, %v221
    %v228 = vunpack.c.l.b16 %v212
    %v229 = vunpack.c.l.b16 %v213
    %v230 = vunpack.c.l.b16 %v214
    %v231 = vunpack.c.l.b16 %v215
    %v232 = vpack.c.b16 %v229, %v228
    %v233 = vpack.c.b16 %v231, %v230
    %v237 = vsel %vm167, %v217, 0
    %239 = vmatprep.subr.bf16.mxu0 0
    %240 = vmatpush1.bf16.msra.mxu0 0
    %241 = vmatprep.subr.bf16.mxu0 0
    %242 = vmatpush1.bf16.msra.mxu0 0
    %243 = vmatprep.subr.bf16.mxu0 0
    %244 = vmatpush1.bf16.msra.mxu0 0
    %245 = vmatprep.subr.bf16.mxu0 0
    %246 = vmatpush1.bf16.msra.mxu0 0
    %247 = vmatprep.subr.bf16.mxu0 0
    %248 = vmatpush1.bf16.msra.mxu0 0
    %249 = vmatprep.subr.bf16.mxu0 0
    %250 = vmatpush1.bf16.msra.mxu0 0
    %251 = vmatprep.subr.bf16.mxu0 0
    %252 = vmatpush1.bf16.msra.mxu0 %v233
    %253 = vmatprep.subr.bf16.mxu0 0
    %254 = vmatpush1.bf16.msra.mxu0 %v232
    %255 = vmatprep.subr.bf16.mxu0 0
    %256 = vmatpush2.bf16.msra.mxu0 0
    %257 = vmatprep.subr.bf16.mxu0 0
    %258 = vmatpush2.bf16.msra.mxu0 0
    %259 = vmatprep.subr.bf16.mxu0 0
    %260 = vmatpush2.bf16.msra.mxu0 0
    %261 = vmatprep.subr.bf16.mxu0 0
    %262 = vmatpush2.bf16.msra.mxu0 0
    %263 = vmatprep.subr.bf16.mxu0 0
    %264 = vmatpush2.bf16.msra.mxu0 0
    %265 = vmatprep.subr.bf16.mxu0 0
    %266 = vmatpush2.bf16.msra.mxu0 0
    %267 = vmatprep.subr.bf16.mxu0 0
    %268 = vmatpush2.bf16.msra.mxu0 0
    %269 = vmatprep.subr.bf16.mxu0 0
    %270 = vmatpush2.bf16.msra.mxu0 0
    %271 = vmatprep.mubr.bf16.mxu0 0
    %272 = vmatmul.mubr.bf16.gmra.mxu0 %v237
    %v273 = vpop.f32.mrf.mxu0
    %v274 = vadd.f32 %v222, %v273
    %v275 = vpop.f32.mrf.mxu0
    %v276 = vpop.f32.mrf.mxu0
    %v277 = vpop.f32.mrf.mxu0
    %278 = vdwg.mxu0
    %279 = vst [vmem:[#allocation10] sm:$0xff] %v274
    // Predicated region
    $region46: #{tpu_custom_call.1} parent=1 // pred_check
      _
    $region47: #{tpu_custom_call.1} parent=1 // pred_check_branch
      %281 = sbr.rel (0) target = $region49
    $region48: #{tpu_custom_call.1} parent=1 // pred_region
      %s283 = ssub.s32 128, 128
      %284 = vsyncadd [#allocation4], %s283
      %s286 = sshll.u32 [#allocation10], 4
      %s287 = int_to_ptr.vmem [resolvable:$true] %s286
      %289 = dma.vmem_to_hbm [thread:$0]  %s287, 128, %s7, [#allocation4]
    $region49: #{tpu_custom_call.1} parent=1 // pred_fallthru
      _
    // Predicated region
    $region50: #{tpu_custom_call.1} parent=1 // pred_check
      _
    $region51: #{tpu_custom_call.1} parent=1 // pred_check_branch
      %291 = sbr.rel (0) target = $region53
    $region52: #{tpu_custom_call.1} parent=1 // pred_region
      %292 = dma.done [#allocation4], 128
    $region53: #{tpu_custom_call.1} parent=1 // pred_fallthru
      _
    %293 = vsyncpa [#allocation3], 1
    %294 = vsyncpa [#allocation6], 1
    %295 = vsyncpa [#allocation9], 1
    %296 = vsyncpa [#allocation4], 1

</llo_original>
